<compile_context>
chip_gen: v5e
topology: v5e:2x2
jax: 0.10.0
libtpu: 0.0.40
codegen_flags: <defaults>
</compile_context>

<pallas_src>
import functools
import math

import jax
import jax.numpy as jnp
from jax.experimental import pallas as pl
from jax.experimental.pallas import tpu as pltpu  # noqa: F401  (TPU backend / memory spaces)


def _build_embedding(num_steps: int, half_dim: int) -> jnp.ndarray:
    """Matches DiffusionEmbedding._build_embedding (torch) exactly."""
    steps = jnp.arange(num_steps, dtype=jnp.float32)[:, None]               # (T, 1)
    freqs = (10.0 ** (jnp.arange(half_dim, dtype=jnp.float32)
                      / (half_dim - 1) * 4.0))[None, :]                      # (1, D/2)
    table = steps * freqs                                                    # (T, D/2)
    return jnp.concatenate([jnp.sin(table), jnp.cos(table)], axis=1)         # (T, D)


def _diff_emb_kernel(steps_ref,    # VMEM (B_pad, 1) int32
                     params_ref,   # VMEM (T_pad + P + 1, P) f32: [silu1_table; W2; b2]
                     o_ref,        # VMEM (B_pad, P) f32
                     *, t_pad: int, p: int):
    b_pad = o_ref.shape[0]

    # --- Fused gather via one-hot MXU matmul (no per-row sublane shuffles). ---
    steps = steps_ref[...]                                                   # (B_pad, 1) i32
    iota = jax.lax.broadcasted_iota(jnp.int32, (b_pad, t_pad), 1)            # (B_pad, T_pad)
    one_hot = (iota == steps).astype(jnp.float32)                            # exact 0/1

    table = params_ref[0:t_pad, :]                                           # (T_pad, P)
    w2 = params_ref[t_pad:t_pad + p, :]                                      # (P, P)
    b2 = params_ref[t_pad + p:t_pad + p + 1, :]                              # (1, P)

    # x = silu(emb[step] @ W1 + b1), gathered from the precomputed table.
    x = jnp.dot(one_hot, table, preferred_element_type=jnp.float32)          # (B_pad, P)

    # Layer 2 in f32, SiLU via EUP exp + approximate reciprocal.
    h = jnp.dot(x, w2, preferred_element_type=jnp.float32) + b2              # (B_pad, P)
    sig = pl.reciprocal(1.0 + jnp.exp(-h), approx=True)
    o_ref[...] = (h * sig).astype(o_ref.dtype)


def _round_up(x: int, m: int) -> int:
    return pl.cdiv(x, m) * m


def diffusion_embedding_forward(diffusion_step, embedding_table, w1, b1, w2, b2):
    """diffusion_step: int array (B,). Returns (B, P) float32.

    Weights are stored (in_features, out_features): y = x @ W + b.
    """
    B = diffusion_step.shape[0]
    T, _E = embedding_table.shape
    P = w1.shape[1]

    # Clamp steps: an out-of-range index would silently gather garbage on TPU.
    steps = jnp.clip(diffusion_step.astype(jnp.int32), 0, T - 1)

    # Pad batch to the f32 sublane multiple (unmasked stores); padded rows reuse
    # step 0 and are sliced off before returning.
    B_pad = max(8, _round_up(B, 8))
    if B_pad != B:
        steps = jnp.pad(steps, (0, B_pad - B))
    steps_2d = steps.reshape(B_pad, 1)

    # --- One-time precompute (hoisted layer 1). ---------------------------------
    # gather ∘ linear is linear, so silu(emb @ W1 + b1) is a fixed (T, P) table
    # per parameter set.  In a denoising loop this is computed once and cached;
    # recomputing it here keeps the example self-contained.
    h1 = jnp.dot(embedding_table, w1, precision=jax.lax.Precision.HIGHEST) + b1
    h1 = h1 * jax.nn.sigmoid(h1)                                             # (T, P) f32

    # Pad table rows to a multiple of 128 so the one-hot matmul contraction dim
    # is lane-aligned (padded rows are zero and never selected).
    T_pad = _round_up(T, 128)
    h1_pad = jnp.pad(h1, ((0, T_pad - T), (0, 0)))

    # Pack [silu1 table ; W2 ; b2] into a single f32 input -> one weight DMA.
    params = jnp.concatenate([h1_pad, w2, b2.reshape(1, P)], axis=0)         # (T_pad+P+1, P)

    kernel = functools.partial(_diff_emb_kernel, t_pad=T_pad, p=P)
    out = pl.pallas_call(
        kernel,
        out_shape=jax.ShapeDtypeStruct((B_pad, P), jnp.float32),
        grid=(1,),
        in_specs=[
            pl.BlockSpec((B_pad, 1), lambda i: (0, 0)),
            pl.BlockSpec((T_pad + P + 1, P), lambda i: (0, 0)),
        ],
        out_specs=pl.BlockSpec((B_pad, P), lambda i: (0, 0)),
    )(steps_2d, params)

    return out[:B]


def reference_forward(diffusion_step, embedding_table, w1, b1, w2, b2):
    """Pure f32 JAX reference matching the torch module."""
    x = embedding_table[diffusion_step]
    h = jnp.dot(x, w1, precision=jax.lax.Precision.HIGHEST) + b1
    h = h * jax.nn.sigmoid(h)
    h2 = jnp.dot(h, w2, precision=jax.lax.Precision.HIGHEST) + b2
    return h2 * jax.nn.sigmoid(h2)


def make_params(key, embedding_dim: int, projection_dim: int):
    """Init mirroring nn.Linear defaults (uniform +/- 1/sqrt(fan_in))."""
    k1, k2, k3, k4 = jax.random.split(key, 4)
    bound1 = 1.0 / math.sqrt(embedding_dim)
    bound2 = 1.0 / math.sqrt(projection_dim)
    w1 = jax.random.uniform(k1, (embedding_dim, projection_dim), jnp.float32, -bound1, bound1)
    b1 = jax.random.uniform(k2, (projection_dim,), jnp.float32, -bound1, bound1)
    w2 = jax.random.uniform(k3, (projection_dim, projection_dim), jnp.float32, -bound2, bound2)
    b2 = jax.random.uniform(k4, (projection_dim,), jnp.float32, -bound2, bound2)
    return w1, b1, w2, b2


if __name__ == "__main__":
    num_steps = 50
    embedding_dim = 128
    projection_dim = 128
    batch = 8

    key = jax.random.PRNGKey(0)
    k_param, k_step = jax.random.split(key)

    embedding_table = _build_embedding(num_steps, embedding_dim // 2)        # (50, 128)
    w1, b1, w2, b2 = make_params(k_param, embedding_dim, projection_dim)
    diffusion_step = jax.random.randint(k_step, (batch,), 0, num_steps, dtype=jnp.int32)

    out = diffusion_embedding_forward(diffusion_step, embedding_table, w1, b1, w2, b2)
    out = jax.block_until_ready(out)

    ref = reference_forward(diffusion_step, embedding_table, w1, b1, w2, b2)

    assert out.shape == (batch, projection_dim)
    # Everything is f32; the only approximation is the EUP reciprocal in the
    # final sigmoid, so a 5e-3 tolerance leaves ample headroom.
    assert bool(jnp.allclose(out, ref, atol=5e-3, rtol=5e-3)), "mismatch vs f32 reference"

    print("KERNEL_OK")
</pallas_src>

<mosaic_0001>
module attributes {stable_mosaic.version = 11 : i64} {
  func.func @_diff_emb_kernel(%arg0: i32, %arg1: memref<8x1xi32, #tpu.memory_space<vmem>>, %arg2: memref<257x128xf32, #tpu.memory_space<vmem>>, %arg3: memref<8x128xf32, #tpu.memory_space<vmem>>) attributes {dimension_semantics = [#tpu.dimension_semantics<arbitrary>], iteration_bounds = array<i64: 1>, scalar_prefetch = 0 : i64, scratch_operands = 0 : i64, tpu.core_type = #tpu.core_type<tc>, window_params = [{pipeline_mode = #tpu.pipeline_mode<synchronous>, transform_indices = @transform_0, window_bounds = array<i64: 8, 1>}, {pipeline_mode = #tpu.pipeline_mode<synchronous>, transform_indices = @transform_1, window_bounds = array<i64: 257, 128>}, {pipeline_mode = #tpu.pipeline_mode<synchronous>, transform_indices = @transform_2, window_bounds = array<i64: 8, 128>}]} {
    %c0 = arith.constant 0 : index
    %c0_0 = arith.constant 0 : index
    %0 = vector.load %arg1[%c0, %c0_0] : memref<8x1xi32, #tpu.memory_space<vmem>>, vector<8x1xi32>
    %1 = tpu.iota {dimensions = array<i32: 1>} : vector<8x128xi32>
    %2 = vector.broadcast %0 : vector<8x1xi32> to vector<8x128xi32>
    %3 = arith.cmpi eq, %1, %2 : vector<8x128xi32>
    %4 = arith.extui %3 : vector<8x128xi1> to vector<8x128xi32>
    %5 = arith.sitofp %4 : vector<8x128xi32> to vector<8x128xf32>
    %c0_1 = arith.constant 0 : index
    %c0_2 = arith.constant 0 : index
    %6 = vector.load %arg2[%c0_1, %c0_2] : memref<257x128xf32, #tpu.memory_space<vmem>>, vector<128x128xf32>
    %c128 = arith.constant 128 : index
    %c0_3 = arith.constant 0 : index
    %7 = vector.load %arg2[%c128, %c0_3] : memref<257x128xf32, #tpu.memory_space<vmem>>, vector<128x128xf32>
    %c256 = arith.constant 256 : index
    %c0_4 = arith.constant 0 : index
    %8 = vector.load %arg2[%c256, %c0_4] : memref<257x128xf32, #tpu.memory_space<vmem>>, vector<1x128xf32>
    %cst = arith.constant dense<0.000000e+00> : vector<8x128xf32>
    %9 = tpu.matmul %5, %6, %cst {dimension_numbers = #tpu.dot_dimension_numbers<[1], [0], [0], [1], [0, 0, 1, 1], [], []>} : vector<8x128xf32>, vector<128x128xf32>, vector<8x128xf32> -> vector<8x128xf32>
    %cst_5 = arith.constant dense<0.000000e+00> : vector<8x128xf32>
    %10 = tpu.matmul %9, %7, %cst_5 {dimension_numbers = #tpu.dot_dimension_numbers<[1], [0], [0], [1], [0, 0, 1, 1], [], []>} : vector<8x128xf32>, vector<128x128xf32>, vector<8x128xf32> -> vector<8x128xf32>
    %11 = vector.broadcast %8 : vector<1x128xf32> to vector<8x128xf32>
    %12 = arith.addf %10, %11 : vector<8x128xf32>
    %cst_6 = arith.constant 0.000000e+00 : f32
    %13 = vector.broadcast %cst_6 : f32 to vector<8x128xf32>
    %14 = arith.subf %13, %12 : vector<8x128xf32>
    %15 = math.exp %14 : vector<8x128xf32>
    %cst_7 = arith.constant 1.000000e+00 : f32
    %16 = vector.broadcast %cst_7 : f32 to vector<8x128xf32>
    %17 = arith.addf %16, %15 : vector<8x128xf32>
    %18 = tpu.reciprocal %17 {approx = true} : vector<8x128xf32> -> vector<8x128xf32>
    %19 = arith.mulf %12, %18 : vector<8x128xf32>
    %c0_8 = arith.constant 0 : index
    %c0_9 = arith.constant 0 : index
    %20 = vector.load %arg3[%c0_8, %c0_9] : memref<8x128xf32, #tpu.memory_space<vmem>>, vector<8x128xf32>
    tpu.vector_store %arg3[%c0_8, %c0_9], %19 {strides = array<i32>} : memref<8x128xf32, #tpu.memory_space<vmem>>, vector<8x128xf32>,
    return
  }
  func.func @transform_0(%arg0: i32) -> (i32, i32) {
    %c0_i32 = arith.constant 0 : i32
    %c0_i32_0 = arith.constant 0 : i32
    %c0_i32_1 = arith.constant 0 : i32
    return %c0_i32, %c0_i32_0 : i32, i32
  }
  func.func @transform_1(%arg0: i32) -> (i32, i32) {
    %c0_i32 = arith.constant 0 : i32
    %c0_i32_0 = arith.constant 0 : i32
    %c0_i32_1 = arith.constant 0 : i32
    return %c0_i32, %c0_i32_0 : i32, i32
  }
  func.func @transform_2(%arg0: i32) -> (i32, i32) {
    %c0_i32 = arith.constant 0 : i32
    %c0_i32_0 = arith.constant 0 : i32
    %c0_i32_1 = arith.constant 0 : i32
    return %c0_i32, %c0_i32_0 : i32, i32
  }
}

</mosaic_0001>

<llo_original>
// kernel: tpu_custom_call.1
$region0: #{tpu_custom_call.1}
  #allocation0 [shape = 'u32[]', space=smem, size = 0x4, offset = 0x4, fixed_abs, tag = 'smem constant byte address 0x4 - core index']
  #allocation1 [shape = 'u32[72,128]{1,0:T(1,128)}', space=vmem, size = 0x9000, scoped, tag = 'internal scratch']
  %s0 = inlined_call_operand.vmem [shape: s32[8,1], index: 0, kind: input, shape index: {}]
  %s1 = inlined_call_operand.hbm [shape: f32[257,128], index: 1, kind: input, shape index: {}]
  %s2 = inlined_call_operand.hbm [shape: f32[8,128], index: 2, kind: output, shape index: {}]
  %s3 = sld [smem:[#allocation0]]
  $region22: #{tpu_custom_call.1} parent=0
    _
  %s5 = ssub.s32 1, %s3
  %s6 = scalar_select 0, %s5, %s3
  $region1: #{tpu_custom_call.1} parent=0
    #allocation2 [shape = 'u8[135168]{0}', space=vmem, size = 0x21000, scoped, tag = 'input window, operand 1, single buffered']
    #allocation3 [shape = 's32[1]{0}', space=sflag, size = 0x4, scoped, tag = 'scoped memory for tpu_custom_call.1']
    #allocation4 [shape = 's32[1]{0}', space=sflag, size = 0x4, scoped, tag = 'scoped memory for tpu_custom_call.1']
    #allocation5 [shape = 'u8[4096]{0}', space=vmem, size = 0x1000, scoped, tag = 'output window, operand 0, single buffered']
    %7 = vsyncpa [#allocation3], 0
    %8 = vsyncpa [#allocation4], 0
    // Predicated region
    $region2: #{tpu_custom_call.1} parent=1 // pred_check
      _
    $region3: #{tpu_custom_call.1} parent=1 // pred_check_branch
      %10 = sbr.rel (0) target = $region5
    $region4: #{tpu_custom_call.1} parent=1 // pred_region
      _
    $region5: #{tpu_custom_call.1} parent=1 // pred_fallthru
      _
    // Predicated region
    $region6: #{tpu_custom_call.1} parent=1 // pred_check
      _
    $region7: #{tpu_custom_call.1} parent=1 // pred_check_branch
      %12 = sbr.rel (0) target = $region9
    $region8: #{tpu_custom_call.1} parent=1 // pred_region
      %14 = vsyncadd [#allocation3], 0
      %s15 = sshll.u32 %s1, 4
      %s16 = int_to_ptr.hbm [resolvable:$true] %s15
      %s17 = sshll.u32 [#allocation2], 4
      %s18 = int_to_ptr.vmem [resolvable:$true] %s17
      %23 = dma.hbm_to_vmem [thread:$0]  %s16, 4224, %s18, [#allocation3], 128, 128, 8
    $region9: #{tpu_custom_call.1} parent=1 // pred_fallthru
      _
    // Predicated region
    $region10: #{tpu_custom_call.1} parent=1 // pred_check
      _
    $region11: #{tpu_custom_call.1} parent=1 // pred_check_branch
      %25 = sbr.rel (0) target = $region13
    $region12: #{tpu_custom_call.1} parent=1 // pred_region
      %27 = dma.done [#allocation3], 4224
    $region13: #{tpu_custom_call.1} parent=1 // pred_fallthru
      _
    %v28 = vld [vmem:[%s0] sm:$0xff]
    %v29 = vlaneseq
    %v30 = vand.u32 %v29, 127
    %31 = vset.pattern.permute.xlu0 0
    %32 = vperm.xlu0 %31, %v28
    %v33 = vpop.permute.xlu0 %32
    %vm34 = vcmp.eq.s32.totalorder %v30, %v33
    %v35 = vsel %vm34, 1, 0
    %v36 = vcvt.s32.f32 %v35
    %v37 = vld [vmem:[#allocation2] sm:$0xff]
    %v38 = vld [vmem:[#allocation2 + $0x8] sm:$0xff]
    %v39 = vld [vmem:[#allocation2 + $0x10] sm:$0xff]
    %v40 = vld [vmem:[#allocation2 + $0x18] sm:$0xff]
    %v41 = vld [vmem:[#allocation2 + $0x20] sm:$0xff]
    %v42 = vld [vmem:[#allocation2 + $0x28] sm:$0xff]
    %v43 = vld [vmem:[#allocation2 + $0x30] sm:$0xff]
    %v44 = vld [vmem:[#allocation2 + $0x38] sm:$0xff]
    %v45 = vld [vmem:[#allocation2 + $0x40] sm:$0xff]
    %v46 = vld [vmem:[#allocation2 + $0x48] sm:$0xff]
    %v47 = vld [vmem:[#allocation2 + $0x50] sm:$0xff]
    %v48 = vld [vmem:[#allocation2 + $0x58] sm:$0xff]
    %v49 = vld [vmem:[#allocation2 + $0x60] sm:$0xff]
    %v50 = vld [vmem:[#allocation2 + $0x68] sm:$0xff]
    %v51 = vld [vmem:[#allocation2 + $0x70] sm:$0xff]
    %v52 = vld [vmem:[#allocation2 + $0x78] sm:$0xff]
    %v53 = vld [vmem:[#allocation2 + $0x80] sm:$0xff]
    %v54 = vld [vmem:[#allocation2 + $0x88] sm:$0xff]
    %v55 = vld [vmem:[#allocation2 + $0x90] sm:$0xff]
    %v56 = vld [vmem:[#allocation2 + $0x98] sm:$0xff]
    %v57 = vld [vmem:[#allocation2 + $0xa0] sm:$0xff]
    %v58 = vld [vmem:[#allocation2 + $0xa8] sm:$0xff]
    %v59 = vld [vmem:[#allocation2 + $0xb0] sm:$0xff]
    %v60 = vld [vmem:[#allocation2 + $0xb8] sm:$0xff]
    %v61 = vld [vmem:[#allocation2 + $0xc0] sm:$0xff]
    %v62 = vld [vmem:[#allocation2 + $0xc8] sm:$0xff]
    %v63 = vld [vmem:[#allocation2 + $0xd0] sm:$0xff]
    %v64 = vld [vmem:[#allocation2 + $0xd8] sm:$0xff]
    %v65 = vld [vmem:[#allocation2 + $0xe0] sm:$0xff]
    %v66 = vld [vmem:[#allocation2 + $0xe8] sm:$0xff]
    %v67 = vld [vmem:[#allocation2 + $0xf0] sm:$0xff]
    %v68 = vld [vmem:[#allocation2 + $0xf8] sm:$0xff]
    %v69 = vld [vmem:[#allocation2 + $0x100] sm:$0x1]
    %70 = vmatpush.msra.mxu0 %v52
    %71 = vmatpush.msra.mxu0 %v51
    %72 = vmatpush.msra.mxu0 %v50
    %73 = vmatpush.msra.mxu0 %v49
    %74 = vmatpush.msra.mxu0 %v48
    %75 = vmatpush.msra.mxu0 %v47
    %76 = vmatpush.msra.mxu0 %v46
    %77 = vmatpush.msra.mxu0 %v45
    %78 = vmatpush.msra.mxu0 %v44
    %79 = vmatpush.msra.mxu0 %v43
    %80 = vmatpush.msra.mxu0 %v42
    %81 = vmatpush.msra.mxu0 %v41
    %82 = vmatpush.msra.mxu0 %v40
    %83 = vmatpush.msra.mxu0 %v39
    %84 = vmatpush.msra.mxu0 %v38
    %85 = vmatpush.msra.mxu0 %v37
    %86 = vmatmul.f32.gmra.mxu0 %v36
    %v87 = vpop.f32.mrf.mxu0
    %v88 = vadd.f32 0.0, %v87
    %89 = vdwg.mxu0
    %v90 = vperm.slane %v69, 0
    %91 = vmatpush.msra.mxu0 %v68
    %92 = vmatpush.msra.mxu0 %v67
    %93 = vmatpush.msra.mxu0 %v66
    %94 = vmatpush.msra.mxu0 %v65
    %95 = vmatpush.msra.mxu0 %v64
    %96 = vmatpush.msra.mxu0 %v63
    %97 = vmatpush.msra.mxu0 %v62
    %98 = vmatpush.msra.mxu0 %v61
    %99 = vmatpush.msra.mxu0 %v60
    %100 = vmatpush.msra.mxu0 %v59
    %101 = vmatpush.msra.mxu0 %v58
    %102 = vmatpush.msra.mxu0 %v57
    %103 = vmatpush.msra.mxu0 %v56
    %104 = vmatpush.msra.mxu0 %v55
    %105 = vmatpush.msra.mxu0 %v54
    %106 = vmatpush.msra.mxu0 %v53
    %107 = vmatmul.f32.gmra.mxu0 %v88
    %v108 = vpop.f32.mrf.mxu0
    %v109 = vadd.f32 %v90, %v108
    %110 = vdwg.mxu0
    %v111 = vsub.f32 0.0, %v109
    %v112 = vmul.f32 %v111, 1.442695
    %v113 = vpow.pop %v112
    %v114 = vadd.f32 %v113, 1.0
    %v115 = vrcp.pop %v114
    %v116 = vmul.f32 %v109, %v115
    %117 = vst [vmem:[#allocation5] sm:$0xff] %v116
    // Predicated region
    $region14: #{tpu_custom_call.1} parent=1 // pred_check
      _
    $region15: #{tpu_custom_call.1} parent=1 // pred_check_branch
      %119 = sbr.rel (0) target = $region17
    $region16: #{tpu_custom_call.1} parent=1 // pred_region
      %121 = vsyncadd [#allocation4], 0
      %s123 = sshll.u32 [#allocation5], 4
      %s124 = int_to_ptr.vmem [resolvable:$true] %s123
      %s125 = sshll.u32 %s2, 4
      %s126 = int_to_ptr.hbm [resolvable:$true] %s125
      %128 = dma.vmem_to_hbm [thread:$0]  %s124, 128, %s126, [#allocation4]
    $region17: #{tpu_custom_call.1} parent=1 // pred_fallthru
      _
    // Predicated region
    $region18: #{tpu_custom_call.1} parent=1 // pred_check
      _
    $region19: #{tpu_custom_call.1} parent=1 // pred_check_branch
      %130 = sbr.rel (0) target = $region21
    $region20: #{tpu_custom_call.1} parent=1 // pred_region
      %132 = dma.done [#allocation4], 128
    $region21: #{tpu_custom_call.1} parent=1 // pred_fallthru
      _
    %133 = vsyncpa [#allocation3], 1
    %134 = vsyncpa [#allocation4], 1

</llo_original>
